<compile_context>
chip_gen: v6e
topology: v6e:2x2x1
jax: 0.10.0
libtpu: 0.0.40
codegen_flags: <defaults>
</compile_context>

<pallas_src>
import functools

import jax
import jax.numpy as jnp
from jax.experimental import pallas as pl
from jax.experimental.pallas import tpu as pltpu


# ------------------------------- kernel --------------------------------------
def _conv_block_kernel(x_ref, w_ref, b_ref, o_ref, im2row_ref, *,
                       padding, use_act, negative_slope):
    # x_ref     : (Nb, H, W*Cin)            bf16, block of Nb images
    # w_ref     : (KH*W*Cin, Wout*Cout)     structured (Toeplitz) weight, bf16
    # b_ref     : (1, Wout*Cout)            bias tiled over W, f32
    # o_ref     : (Nb, Hout, Wout*Cout)     lane-dense output
    # im2row_ref: (Nb*Hout, KH*W*Cin)       bf16 im2row scratch
    Nb, H, WC = x_ref.shape
    Hout = o_ref.shape[1]
    KH = w_ref.shape[0] // WC

    # Build the im2row lhs: row (n*Hout + h) is the concatenation over kh of
    # the vertically zero-padded input row (h + kh - padding) of image n.
    # Horizontal (kw) zero padding needs no physical zeros because the
    # out-of-range taps were dropped from the structured weight.  Only the
    # few border rows (never covered by the copies below) are zeroed.
    for n in range(Nb):
        for kh in range(KH):
            lo = max(0, padding - kh)             # first output row with data
            hi = min(Hout, H + padding - kh)      # one past the last such row
            r0 = n * Hout
            c0 = kh * WC
            if lo > 0:
                im2row_ref[r0:r0 + lo, c0:c0 + WC] = jnp.zeros(
                    (lo, WC), im2row_ref.dtype)
            if hi < Hout:
                im2row_ref[r0 + hi:r0 + Hout, c0:c0 + WC] = jnp.zeros(
                    (Hout - hi, WC), im2row_ref.dtype)
            if hi > lo:
                im2row_ref[r0 + lo:r0 + hi, c0:c0 + WC] = x_ref[
                    n, lo + kh - padding:hi + kh - padding, :]

    # ONE MXU contraction: (Nb*Hout, KH*W*Cin) x (KH*W*Cin, Wout*Cout),
    # bf16 inputs, f32 accumulation.
    acc = jnp.dot(im2row_ref[...], w_ref[...],
                  preferred_element_type=jnp.float32)
    acc = acc + b_ref[...]                        # (1, ncols) broadcasts over M
    if use_act:                                   # LeakyReLU(0.2) / Identity
        acc = jnp.where(acc >= 0.0, acc, negative_slope * acc)

    for n in range(Nb):                           # unmasked full-lane stores
        o_ref[n, :, :] = acc[n * Hout:(n + 1) * Hout].astype(o_ref.dtype)


# ------------------------------ wrappers --------------------------------------
def _largest_divisor_at_most(n, cap):
    for d in range(min(n, cap), 0, -1):
        if n % d == 0:
            return d
    return 1


def prepare_conv_block_params(weight, bias, image_width, *, padding=1,
                              mxu_dtype=jnp.bfloat16):
    """Structured (Toeplitz) weight + W-tiled bias for one ConvBlock layer.

    Static per layer: in a real model call once per layer and cache the
    result (it is reused by every forward call).

      w_big[kh*W*Cin + w'*Cin + ci, w*Cout + co]
          = weight[co, ci, kh, w' - w + padding]   if 0 <= w'-w+padding < KW
          = 0 otherwise (out-of-range tap == horizontal zero padding)
    """
    Cout, Cin, KH, KW = weight.shape
    W = image_width
    Wout = W + 2 * padding - KW + 1
    w_t = jnp.transpose(weight, (2, 3, 1, 0)).astype(mxu_dtype)  # (KH,KW,Cin,Cout)
    wp = jnp.arange(W)[:, None, None]
    wo = jnp.arange(Wout)[None, :, None]
    kw = jnp.arange(KW)[None, None, :]
    onehot = (wp == wo + kw - padding).astype(mxu_dtype)         # (W,Wout,KW)
    # At most one kw matches per (w', w) pair, so the bf16 einsum is exact.
    w_big = jnp.einsum('akic,pwk->apiwc', w_t, onehot)           # (KH,W,Cin,Wout,Cout)
    w_big = w_big.reshape(KH * W * Cin, Wout * Cout)
    b_flat = jnp.tile(bias.astype(jnp.float32), Wout).reshape(1, Wout * Cout)
    return w_big, b_flat


def conv_block_lane_dense(x2d, w_big, b_flat, *, in_channels, out_channels,
                          padding=1, use_act=True, negative_slope=0.2,
                          images_per_step=8, out_dtype=jnp.float32,
                          vmem_limit_bytes=None):
    """act(Conv2d(x)) on the lane-dense (N, H, W*Cin) activation layout.

    Chained ConvBlocks should stay in this layout and only convert
    NCHW <-> lane-dense at the model boundary (saves two HBM-bandwidth
    transpose passes per layer).
    """
    N, H, WCin = x2d.shape
    Cin, Cout = in_channels, out_channels
    W = WCin // Cin
    KH = w_big.shape[0] // (W * Cin)
    Wout = w_big.shape[1] // Cout
    Hout = H + 2 * padding - KH + 1
    assert w_big.shape == (KH * W * Cin, Wout * Cout), w_big.shape
    assert b_flat.shape == (1, Wout * Cout), b_flat.shape

    # Images per grid step: amortizes per-step overhead and raises the matmul
    # M dim to Nb*Hout.  (For large N prefer keeping N//Nb a multiple of 2 so
    # both v7x TensorCores stay busy.)
    Nb = _largest_divisor_at_most(N, images_per_step)

    kernel = functools.partial(
        _conv_block_kernel, padding=padding, use_act=use_act,
        negative_slope=negative_slope)

    return pl.pallas_call(
        kernel,
        out_shape=jax.ShapeDtypeStruct((N, Hout, Wout * Cout), out_dtype),
        grid_spec=pltpu.PrefetchScalarGridSpec(
            num_scalar_prefetch=0,
            grid=(N // Nb,),
            in_specs=[
                pl.BlockSpec((Nb, H, W * Cin), lambda n: (n, 0, 0)),
                # Grid-invariant weight (constant index_map).
                # TODO(synk): single-buffer via pipeline_mode=pl.Buffered(1)
                # at production sizes to halve its VMEM footprint.
                pl.BlockSpec((KH * W * Cin, Wout * Cout), lambda n: (0, 0)),
                pl.BlockSpec((1, Wout * Cout), lambda n: (0, 0)),
            ],
            out_specs=pl.BlockSpec((Nb, Hout, Wout * Cout),
                                   lambda n: (n, 0, 0)),
            scratch_shapes=[
                pltpu.VMEM((Nb * Hout, KH * W * Cin), w_big.dtype),
            ],
        ),
        compiler_params=pltpu.CompilerParams(
            dimension_semantics=("parallel",),
            vmem_limit_bytes=vmem_limit_bytes),
    )(x2d, w_big, b_flat)


def conv_block(x_nchw, weight, bias, *, use_act=True, stride=1, padding=1,
               negative_slope=0.2, mxu_dtype=jnp.bfloat16, images_per_step=8,
               vmem_limit_bytes=None):
    """ConvBlock forward: act(Conv2d(x)); NCHW in/out, PyTorch weight layout."""
    if stride != 1:
        raise NotImplementedError("TODO(synk): stride > 1 not implemented")
    N, Cin, H, W = x_nchw.shape
    Cout, Cin_w, KH, KW = weight.shape
    assert Cin_w == Cin, (Cin_w, Cin)
    assert KH == KW, (KH, KW)
    Hout = H + 2 * padding - KH + 1
    Wout = W + 2 * padding - KW + 1

    # NCHW -> NHWC -> (N, H, W*Cin), cast to bf16 where the transpose already
    # materializes a copy (halves the activation HBM->VMEM DMA bytes).
    x2d = jnp.transpose(x_nchw, (0, 2, 3, 1)).reshape(N, H, W * Cin)
    x2d = x2d.astype(mxu_dtype)

    # Static per layer: in a real model build once and cache.
    w_big, b_flat = prepare_conv_block_params(
        weight, bias, W, padding=padding, mxu_dtype=mxu_dtype)

    out_flat = conv_block_lane_dense(
        x2d, w_big, b_flat, in_channels=Cin, out_channels=Cout,
        padding=padding, use_act=use_act, negative_slope=negative_slope,
        images_per_step=images_per_step, out_dtype=x_nchw.dtype,
        vmem_limit_bytes=vmem_limit_bytes)

    out = out_flat.reshape(N, Hout, Wout, Cout)   # contiguous reshape, free
    return jnp.transpose(out, (0, 3, 1, 2))       # NHWC -> NCHW (model boundary)


def init_conv_block_params(key, in_channels, out_channels, kernel_size=3):
    """PyTorch-default Conv2d init; weight stored in (Cout, Cin, KH, KW)."""
    fan_in = in_channels * kernel_size * kernel_size
    bound = 1.0 / float(fan_in) ** 0.5
    wk, bk = jax.random.split(key)
    weight = jax.random.uniform(
        wk, (out_channels, in_channels, kernel_size, kernel_size),
        jnp.float32, minval=-bound, maxval=bound)
    bias = jax.random.uniform(bk, (out_channels,), jnp.float32,
                              minval=-bound, maxval=bound)
    return weight, bias


if __name__ == "__main__":
    key = jax.random.PRNGKey(0)
    xk, pk = jax.random.split(key)

    N, Cin, H, W = 2, 4, 16, 16
    Cout = 16

    x = jax.random.normal(xk, (N, Cin, H, W), jnp.float32)
    weight, bias = init_conv_block_params(pk, Cin, Cout, kernel_size=3)

    out = jax.block_until_ready(
        conv_block(x, weight, bias, use_act=True, padding=1))
    assert out.shape == (N, Cout, H, W), out.shape

    # Numerical sanity check vs XLA conv (bf16 MXU inputs -> loose tolerance).
    conv_ref = jax.lax.conv_general_dilated(
        x, weight, window_strides=(1, 1), padding=((1, 1), (1, 1)),
        dimension_numbers=('NCHW', 'OIHW', 'NCHW'),
        precision=jax.lax.Precision.HIGHEST) + bias.reshape(1, Cout, 1, 1)
    ref_act = jnp.where(conv_ref >= 0.0, conv_ref, 0.2 * conv_ref)
    err = float(jnp.max(jnp.abs(out - ref_act)))
    assert err < 1e-1, f"max abs err {err}"

    # Also exercise + check the use_act=False (Identity) path.
    out_noact = jax.block_until_ready(
        conv_block(x, weight, bias, use_act=False, padding=1))
    assert out_noact.shape == (N, Cout, H, W), out_noact.shape
    err_noact = float(jnp.max(jnp.abs(out_noact - conv_ref)))
    assert err_noact < 1e-1, f"max abs err (no act) {err_noact}"

    print("KERNEL_OK")
</pallas_src>

<mosaic_0001>
module attributes {stable_mosaic.version = 11 : i64} {
  func.func @_conv_block_kernel(%arg0: i32, %arg1: memref<2x16x64xbf16, #tpu.memory_space<vmem>>, %arg2: memref<192x256xbf16, #tpu.memory_space<vmem>>, %arg3: memref<1x256xf32, #tpu.memory_space<vmem>>, %arg4: memref<2x16x256xf32, #tpu.memory_space<vmem>>, %arg5: memref<32x192xbf16, #tpu.memory_space<vmem>>) attributes {dimension_semantics = [#tpu.dimension_semantics<parallel>], iteration_bounds = array<i64: 1>, scalar_prefetch = 0 : i64, scratch_operands = 1 : i64, tpu.core_type = #tpu.core_type<tc>, window_params = [{transform_indices = @transform_0, window_bounds = array<i64: 2, 16, 64>}, {pipeline_mode = #tpu.pipeline_mode<synchronous>, transform_indices = @transform_1, window_bounds = array<i64: 192, 256>}, {pipeline_mode = #tpu.pipeline_mode<synchronous>, transform_indices = @transform_2, window_bounds = array<i64: 1, 256>}, {transform_indices = @transform_3, window_bounds = array<i64: 2, 16, 256>}]} {
    %cst = arith.constant 0.000000e+00 : bf16
    %0 = vector.broadcast %cst : bf16 to vector<1x64xbf16>
    %c0 = arith.constant 0 : index
    %c0_0 = arith.constant 0 : index
    %1 = vector.load %arg5[%c0, %c0_0] : memref<32x192xbf16, #tpu.memory_space<vmem>>, vector<1x64xbf16>
    tpu.vector_store %arg5[%c0, %c0_0], %0 {strides = array<i32>} : memref<32x192xbf16, #tpu.memory_space<vmem>>, vector<1x64xbf16>,
    %c0_1 = arith.constant 0 : index
    %c0_2 = arith.constant 0 : index
    %c0_3 = arith.constant 0 : index
    %2 = vector.load %arg1[%c0_1, %c0_2, %c0_3] : memref<2x16x64xbf16, #tpu.memory_space<vmem>>, vector<1x15x64xbf16>
    %3 = vector.shape_cast %2 : vector<1x15x64xbf16> to vector<15x64xbf16>
    %c1 = arith.constant 1 : index
    %c0_4 = arith.constant 0 : index
    %4 = vector.load %arg5[%c1, %c0_4] : memref<32x192xbf16, #tpu.memory_space<vmem>>, vector<15x64xbf16>
    tpu.vector_store %arg5[%c1, %c0_4], %3 {strides = array<i32>} : memref<32x192xbf16, #tpu.memory_space<vmem>>, vector<15x64xbf16>,
    %c0_5 = arith.constant 0 : index
    %c0_6 = arith.constant 0 : index
    %c0_7 = arith.constant 0 : index
    %5 = vector.load %arg1[%c0_5, %c0_6, %c0_7] : memref<2x16x64xbf16, #tpu.memory_space<vmem>>, vector<1x16x64xbf16>
    %6 = vector.shape_cast %5 : vector<1x16x64xbf16> to vector<16x64xbf16>
    %c0_8 = arith.constant 0 : index
    %c64 = arith.constant 64 : index
    %7 = vector.load %arg5[%c0_8, %c64] : memref<32x192xbf16, #tpu.memory_space<vmem>>, vector<16x64xbf16>
    tpu.vector_store %arg5[%c0_8, %c64], %6 {strides = array<i32>} : memref<32x192xbf16, #tpu.memory_space<vmem>>, vector<16x64xbf16>,
    %cst_9 = arith.constant 0.000000e+00 : bf16
    %8 = vector.broadcast %cst_9 : bf16 to vector<1x64xbf16>
    %c15 = arith.constant 15 : index
    %c128 = arith.constant 128 : index
    %9 = vector.load %arg5[%c15, %c128] : memref<32x192xbf16, #tpu.memory_space<vmem>>, vector<1x64xbf16>
    tpu.vector_store %arg5[%c15, %c128], %8 {strides = array<i32>} : memref<32x192xbf16, #tpu.memory_space<vmem>>, vector<1x64xbf16>,
    %c0_10 = arith.constant 0 : index
    %c1_11 = arith.constant 1 : index
    %c0_12 = arith.constant 0 : index
    %10 = vector.load %arg1[%c0_10, %c1_11, %c0_12] : memref<2x16x64xbf16, #tpu.memory_space<vmem>>, vector<1x15x64xbf16>
    %11 = vector.shape_cast %10 : vector<1x15x64xbf16> to vector<15x64xbf16>
    %c0_13 = arith.constant 0 : index
    %c128_14 = arith.constant 128 : index
    %12 = vector.load %arg5[%c0_13, %c128_14] : memref<32x192xbf16, #tpu.memory_space<vmem>>, vector<15x64xbf16>
    tpu.vector_store %arg5[%c0_13, %c128_14], %11 {strides = array<i32>} : memref<32x192xbf16, #tpu.memory_space<vmem>>, vector<15x64xbf16>,
    %cst_15 = arith.constant 0.000000e+00 : bf16
    %13 = vector.broadcast %cst_15 : bf16 to vector<1x64xbf16>
    %c16 = arith.constant 16 : index
    %c0_16 = arith.constant 0 : index
    %14 = vector.load %arg5[%c16, %c0_16] : memref<32x192xbf16, #tpu.memory_space<vmem>>, vector<1x64xbf16>
    tpu.vector_store %arg5[%c16, %c0_16], %13 {strides = array<i32>} : memref<32x192xbf16, #tpu.memory_space<vmem>>, vector<1x64xbf16>,
    %c1_17 = arith.constant 1 : index
    %c0_18 = arith.constant 0 : index
    %c0_19 = arith.constant 0 : index
    %15 = vector.load %arg1[%c1_17, %c0_18, %c0_19] : memref<2x16x64xbf16, #tpu.memory_space<vmem>>, vector<1x15x64xbf16>
    %16 = vector.shape_cast %15 : vector<1x15x64xbf16> to vector<15x64xbf16>
    %c17 = arith.constant 17 : index
    %c0_20 = arith.constant 0 : index
    %17 = vector.load %arg5[%c17, %c0_20] : memref<32x192xbf16, #tpu.memory_space<vmem>>, vector<15x64xbf16>
    tpu.vector_store %arg5[%c17, %c0_20], %16 {strides = array<i32>} : memref<32x192xbf16, #tpu.memory_space<vmem>>, vector<15x64xbf16>,
    %c1_21 = arith.constant 1 : index
    %c0_22 = arith.constant 0 : index
    %c0_23 = arith.constant 0 : index
    %18 = vector.load %arg1[%c1_21, %c0_22, %c0_23] : memref<2x16x64xbf16, #tpu.memory_space<vmem>>, vector<1x16x64xbf16>
    %19 = vector.shape_cast %18 : vector<1x16x64xbf16> to vector<16x64xbf16>
    %c16_24 = arith.constant 16 : index
    %c64_25 = arith.constant 64 : index
    %20 = vector.load %arg5[%c16_24, %c64_25] : memref<32x192xbf16, #tpu.memory_space<vmem>>, vector<16x64xbf16>
    tpu.vector_store %arg5[%c16_24, %c64_25], %19 {strides = array<i32>} : memref<32x192xbf16, #tpu.memory_space<vmem>>, vector<16x64xbf16>,
    %cst_26 = arith.constant 0.000000e+00 : bf16
    %21 = vector.broadcast %cst_26 : bf16 to vector<1x64xbf16>
    %c31 = arith.constant 31 : index
    %c128_27 = arith.constant 128 : index
    %22 = vector.load %arg5[%c31, %c128_27] : memref<32x192xbf16, #tpu.memory_space<vmem>>, vector<1x64xbf16>
    tpu.vector_store %arg5[%c31, %c128_27], %21 {strides = array<i32>} : memref<32x192xbf16, #tpu.memory_space<vmem>>, vector<1x64xbf16>,
    %c1_28 = arith.constant 1 : index
    %c1_29 = arith.constant 1 : index
    %c0_30 = arith.constant 0 : index
    %23 = vector.load %arg1[%c1_28, %c1_29, %c0_30] : memref<2x16x64xbf16, #tpu.memory_space<vmem>>, vector<1x15x64xbf16>
    %24 = vector.shape_cast %23 : vector<1x15x64xbf16> to vector<15x64xbf16>
    %c16_31 = arith.constant 16 : index
    %c128_32 = arith.constant 128 : index
    %25 = vector.load %arg5[%c16_31, %c128_32] : memref<32x192xbf16, #tpu.memory_space<vmem>>, vector<15x64xbf16>
    tpu.vector_store %arg5[%c16_31, %c128_32], %24 {strides = array<i32>} : memref<32x192xbf16, #tpu.memory_space<vmem>>, vector<15x64xbf16>,
    %c0_33 = arith.constant 0 : index
    %c0_34 = arith.constant 0 : index
    %26 = vector.load %arg5[%c0_33, %c0_34] : memref<32x192xbf16, #tpu.memory_space<vmem>>, vector<32x192xbf16>
    %c0_35 = arith.constant 0 : index
    %c0_36 = arith.constant 0 : index
    %27 = vector.load %arg2[%c0_35, %c0_36] : memref<192x256xbf16, #tpu.memory_space<vmem>>, vector<192x256xbf16>
    %cst_37 = arith.constant dense<0.000000e+00> : vector<32x256xf32>
    %28 = tpu.matmul %26, %27, %cst_37 {dimension_numbers = #tpu.dot_dimension_numbers<[1], [0], [0], [1], [0, 0, 1, 1], [], []>} : vector<32x192xbf16>, vector<192x256xbf16>, vector<32x256xf32> -> vector<32x256xf32>
    %c0_38 = arith.constant 0 : index
    %c0_39 = arith.constant 0 : index
    %29 = vector.load %arg3[%c0_38, %c0_39] : memref<1x256xf32, #tpu.memory_space<vmem>>, vector<1x256xf32>
    %30 = vector.broadcast %29 : vector<1x256xf32> to vector<32x256xf32>
    %31 = arith.addf %28, %30 : vector<32x256xf32>
    %cst_40 = arith.constant 0.000000e+00 : f32
    %32 = vector.broadcast %cst_40 : f32 to vector<32x256xf32>
    %33 = arith.cmpf oge, %31, %32 : vector<32x256xf32>
    %cst_41 = arith.constant 2.000000e-01 : f32
    %34 = vector.broadcast %cst_41 : f32 to vector<32x256xf32>
    %35 = arith.mulf %34, %31 : vector<32x256xf32>
    %36 = arith.select %33, %31, %35 : vector<32x256xi1>, vector<32x256xf32>
    %37 = vector.extract_strided_slice %36 {offsets = [0, 0], sizes = [16, 256], strides = [1, 1]} : vector<32x256xf32> to vector<16x256xf32>
    %c0_42 = arith.constant 0 : index
    %c0_43 = arith.constant 0 : index
    %c0_44 = arith.constant 0 : index
    %38 = vector.load %arg4[%c0_42, %c0_43, %c0_44] : memref<2x16x256xf32, #tpu.memory_space<vmem>>, vector<1x16x256xf32>
    %39 = vector.shape_cast %38 : vector<1x16x256xf32> to vector<16x256xf32>
    %40 = vector.shape_cast %37 : vector<16x256xf32> to vector<1x16x256xf32>
    tpu.vector_store %arg4[%c0_42, %c0_43, %c0_44], %40 {strides = array<i32>} : memref<2x16x256xf32, #tpu.memory_space<vmem>>, vector<1x16x256xf32>,
    %41 = vector.extract_strided_slice %36 {offsets = [16, 0], sizes = [16, 256], strides = [1, 1]} : vector<32x256xf32> to vector<16x256xf32>
    %c1_45 = arith.constant 1 : index
    %c0_46 = arith.constant 0 : index
    %c0_47 = arith.constant 0 : index
    %42 = vector.load %arg4[%c1_45, %c0_46, %c0_47] : memref<2x16x256xf32, #tpu.memory_space<vmem>>, vector<1x16x256xf32>
    %43 = vector.shape_cast %42 : vector<1x16x256xf32> to vector<16x256xf32>
    %44 = vector.shape_cast %41 : vector<16x256xf32> to vector<1x16x256xf32>
    tpu.vector_store %arg4[%c1_45, %c0_46, %c0_47], %44 {strides = array<i32>} : memref<2x16x256xf32, #tpu.memory_space<vmem>>, vector<1x16x256xf32>,
    return
  }
  func.func @transform_0(%arg0: i32) -> (i32, i32, i32) {
    %c0_i32 = arith.constant 0 : i32
    %c0_i32_0 = arith.constant 0 : i32
    %c0_i32_1 = arith.constant 0 : i32
    return %arg0, %c0_i32, %c0_i32_0 : i32, i32, i32
  }
  func.func @transform_1(%arg0: i32) -> (i32, i32) {
    %c0_i32 = arith.constant 0 : i32
    %c0_i32_0 = arith.constant 0 : i32
    %c0_i32_1 = arith.constant 0 : i32
    return %c0_i32, %c0_i32_0 : i32, i32
  }
  func.func @transform_2(%arg0: i32) -> (i32, i32) {
    %c0_i32 = arith.constant 0 : i32
    %c0_i32_0 = arith.constant 0 : i32
    %c0_i32_1 = arith.constant 0 : i32
    return %c0_i32, %c0_i32_0 : i32, i32
  }
  func.func @transform_3(%arg0: i32) -> (i32, i32, i32) {
    %c0_i32 = arith.constant 0 : i32
    %c0_i32_0 = arith.constant 0 : i32
    %c0_i32_1 = arith.constant 0 : i32
    return %arg0, %c0_i32, %c0_i32_0 : i32, i32, i32
  }
}

</mosaic_0001>

<llo_original>
// kernel: tpu_custom_call.1
$region0: #{tpu_custom_call.1}
  #allocation0 [shape = 'u32[]', space=smem, size = 0x4, offset = 0x4, fixed_abs, tag = 'smem constant byte address 0x4 - core index']
  #allocation1 [shape = 'u32[144,128]{1,0:T(1,128)}', space=vmem, size = 0x12000, scoped, tag = 'internal scratch']
  #allocation2 [shape = 'bf16[32,192]{1,0:T(8,128)(2,1)}', space=vmem, size = 0x4000, scoped, tag = 'scratch operand']
  %s0 = inlined_call_operand.hbm [shape: bf16[2,16,64], index: 0, kind: input, shape index: {}]
  %s1 = inlined_call_operand.hbm [shape: bf16[192,256], index: 1, kind: input, shape index: {}]
  %s2 = inlined_call_operand.vmem [shape: f32[1,256], index: 2, kind: input, shape index: {}]
  %s3 = inlined_call_operand.hbm [shape: f32[2,16,256], index: 3, kind: output, shape index: {}]
  %s4 = sld [smem:[#allocation0]]
  $region30: #{tpu_custom_call.1} parent=0
    _
  %s6 = ssub.s32 1, %s4
  %s7 = scalar_select 0, %s6, %s4
  $region1: #{tpu_custom_call.1} parent=0
    #allocation3 [shape = 'u8[8192]{0}', space=vmem, size = 0x2000, scoped, tag = 'input window, operand 0, single buffered']
    #allocation4 [shape = 's32[1]{0}', space=sflag, size = 0x4, scoped, tag = 'scoped memory for tpu_custom_call.1']
    #allocation5 [shape = 's32[1]{0}', space=sflag, size = 0x4, scoped, tag = 'scoped memory for tpu_custom_call.1']
    #allocation6 [shape = 'u8[98304]{0}', space=vmem, size = 0x18000, scoped, tag = 'input window, operand 1, single buffered']
    #allocation7 [shape = 's32[1]{0}', space=sflag, size = 0x4, scoped, tag = 'scoped memory for tpu_custom_call.1']
    #allocation8 [shape = 'u8[32768]{0}', space=vmem, size = 0x8000, scoped, tag = 'output window, operand 0, single buffered']
    %8 = vsyncpa [#allocation4], 0
    %9 = vsyncpa [#allocation7], 0
    %10 = vsyncpa [#allocation5], 0
    // Predicated region
    $region2: #{tpu_custom_call.1} parent=1 // pred_check
      _
    $region3: #{tpu_custom_call.1} parent=1 // pred_check_branch
      %12 = sbr.rel (0) target = $region5
    $region4: #{tpu_custom_call.1} parent=1 // pred_region
      %s14 = ssub.s32 256, 256
      %15 = vsyncadd [#allocation4], %s14
      %s16 = sshll.u32 [#allocation3], 4
      %s17 = int_to_ptr.vmem [resolvable:$true] %s16
      %22 = dma.hbm_to_vmem [thread:$0]  %s0, 256, %s17, [#allocation4], 64, 64, 4
    $region5: #{tpu_custom_call.1} parent=1 // pred_fallthru
      _
    // Predicated region
    $region6: #{tpu_custom_call.1} parent=1 // pred_check
      _
    $region7: #{tpu_custom_call.1} parent=1 // pred_check_branch
      %24 = sbr.rel (0) target = $region9
    $region8: #{tpu_custom_call.1} parent=1 // pred_region
      %s26 = ssub.s32 3072, 3072
      %27 = vsyncadd [#allocation7], %s26
      %s28 = sshll.u32 [#allocation6], 4
      %s29 = int_to_ptr.vmem [resolvable:$true] %s28
      %34 = dma.hbm_to_vmem [thread:$0]  %s1, 3072, %s29, [#allocation7], 128, 128, 8
    $region9: #{tpu_custom_call.1} parent=1 // pred_fallthru
      _
    // Predicated region
    $region10: #{tpu_custom_call.1} parent=1 // pred_check
      _
    $region11: #{tpu_custom_call.1} parent=1 // pred_check_branch
      %36 = sbr.rel (0) target = $region13
    $region12: #{tpu_custom_call.1} parent=1 // pred_region
      _
    $region13: #{tpu_custom_call.1} parent=1 // pred_fallthru
      _
    // Predicated region
    $region14: #{tpu_custom_call.1} parent=1 // pred_check
      _
    $region15: #{tpu_custom_call.1} parent=1 // pred_check_branch
      %38 = sbr.rel (0) target = $region17
    $region16: #{tpu_custom_call.1} parent=1 // pred_region
      %39 = dma.done [#allocation4], 256
    $region17: #{tpu_custom_call.1} parent=1 // pred_fallthru
      _
    // Predicated region
    $region18: #{tpu_custom_call.1} parent=1 // pred_check
      _
    $region19: #{tpu_custom_call.1} parent=1 // pred_check_branch
      %41 = sbr.rel (0) target = $region21
    $region20: #{tpu_custom_call.1} parent=1 // pred_region
      %42 = dma.done [#allocation7], 3072
    $region21: #{tpu_custom_call.1} parent=1 // pred_fallthru
      _
    %vm44 = vcmask 516096
    %vm45 = vsmask.f32 256
    %vm46 = vmand %vm44, %vm45
    %v47 = vld [vmem:[#allocation2] sm:$0x1]
    %v48 = vsel %vm46, 0, %v47
    %49 = vst [vmem:[#allocation2] sm:$0x1] %v48
    %v50 = vld [vmem:[#allocation3] sm:$0xf]
    %v51 = vld [vmem:[#allocation3 + $0x4] sm:$0xf]
    %vm52 = vsmask.f32 4368
    %vm53 = vmor %vm45, %vm52
    %v55 = vshrl.u32 %v50, 16
    %v57 = vrot.slane %v55, 7
    %v58 = vshll.u32 %v50, 16
    %v60 = vor.u32 %v57, %v58
    %v61 = vrot.slane %v57, 4
    %v63 = vshrl.u32 %v51, 16
    %v65 = vrot.slane %v63, 7
    %v66 = vshll.u32 %v51, 16
    %v68 = vor.u32 %v65, %v66
    %v69 = vsel %vm53, %v61, %v68
    %vm72 = vcmask 519168
    %vm73 = vsmask.f32 7938
    %vm74 = vmand %vm72, %vm73
    %v75 = vld [vmem:[#allocation2] sm:$0xf]
    %v76 = vsel %vm74, %v60, %v75
    %77 = vst [vmem:[#allocation2] sm:$0xf] %v76
    %vm78 = vcmask 519168
    %79 = vst.msk [vmem:[#allocation2 + $0x8] sm:$0xf] %vm78, %v69
    %v80 = vld [vmem:[#allocation3] sm:$0xf]
    %v81 = vld [vmem:[#allocation3 + $0x4] sm:$0xf]
    %84 = vrot.lane.b32.xlu0 %v80, 64
    %v85 = vpop.permute.xlu0 %84
    %86 = vrot.lane.b32.xlu0 %v81, 64
    %v87 = vpop.permute.xlu0 %86
    %vm90 = vcmask 1043968
    %91 = vst.msk [vmem:[#allocation2] sm:$0xf] %vm90, %v85
    %92 = vst.msk [vmem:[#allocation2 + $0x8] sm:$0xf] %vm90, %v87
    %vm93 = vcmask 519171
    %vm94 = vsmask.f32 7950
    %vm95 = vmand %vm93, %vm94
    %v96 = vld [vmem:[#allocation2 + $0xc] sm:$0x8]
    %v97 = vsel %vm95, 0, %v96
    %98 = vst [vmem:[#allocation2 + $0xc] sm:$0x8] %v97
    %v99 = vld [vmem:[#allocation3] sm:$0xf]
    %v100 = vld [vmem:[#allocation3 + $0x4] sm:$0xf]
    %vm101 = vsmask.f32 3328
    %vm102 = vsmask.f32 7440
    %vm103 = vmor %vm101, %vm102
    %v105 = vshrl.u32 %v99, 16
    %v107 = vrot.slane %v105, 4
    %v108 = vshll.u32 %v99, 16
    %v110 = vrot.slane %v108, 5
    %v111 = vor.u32 %v107, %v110
    %v112 = vrot.slane %v111, 4
    %v114 = vshll.u32 %v100, 16
    %v116 = vrot.slane %v114, 5
    %v117 = vsel %vm103, %v112, %v116
    %v118 = vshrl.u32 %v100, 16
    %v120 = vrot.slane %v118, 4
    %v121 = vor.u32 %v120, %v116
    %v122 = vrot.slane %v121, 4
    %125 = vst.msk [vmem:[#allocation2 + $0x4] sm:$0xf] %vm78, %v117
    %vm126 = vmand %vm72, %vm101
    %v127 = vld [vmem:[#allocation2 + $0xc] sm:$0xf]
    %v128 = vsel %vm126, %v122, %v127
    %129 = vst [vmem:[#allocation2 + $0xc] sm:$0xf] %v128
    %v130 = vld [vmem:[#allocation2 + $0x10] sm:$0x1]
    %v131 = vsel %vm46, 0, %v130
    %132 = vst [vmem:[#allocation2 + $0x10] sm:$0x1] %v131
    %s133 = scalar_lea.vmem [#allocation3], 8
    %v134 = vld [vmem:[%s133] sm:$0xf]
    %v135 = vld [vmem:[%s133 + $0x4] sm:$0xf]
    %v137 = vshrl.u32 %v134, 16
    %v139 = vrot.slane %v137, 7
    %v140 = vshll.u32 %v134, 16
    %v142 = vor.u32 %v139, %v140
    %v143 = vrot.slane %v139, 4
    %v145 = vshrl.u32 %v135, 16
    %v147 = vrot.slane %v145, 7
    %v148 = vshll.u32 %v135, 16
    %v150 = vor.u32 %v147, %v148
    %v151 = vsel %vm53, %v143, %v150
    %v154 = vld [vmem:[#allocation2 + $0x10] sm:$0xf]
    %v155 = vsel %vm74, %v142, %v154
    %156 = vst [vmem:[#allocation2 + $0x10] sm:$0xf] %v155
    %157 = vst.msk [vmem:[#allocation2 + $0x18] sm:$0xf] %vm78, %v151
    %v158 = vld [vmem:[%s133] sm:$0xf]
    %v159 = vld [vmem:[%s133 + $0x4] sm:$0xf]
    %162 = vrot.lane.b32.xlu0 %v158, 64
    %v163 = vpop.permute.xlu0 %162
    %164 = vrot.lane.b32.xlu0 %v159, 64
    %v165 = vpop.permute.xlu0 %164
    %168 = vst.msk [vmem:[#allocation2 + $0x10] sm:$0xf] %vm90, %v163
    %169 = vst.msk [vmem:[#allocation2 + $0x18] sm:$0xf] %vm90, %v165
    %v170 = vld [vmem:[#allocation2 + $0x1c] sm:$0x8]
    %v171 = vsel %vm95, 0, %v170
    %172 = vst [vmem:[#allocation2 + $0x1c] sm:$0x8] %v171
    %v173 = vld [vmem:[%s133] sm:$0xf]
    %v174 = vld [vmem:[%s133 + $0x4] sm:$0xf]
    %v176 = vshrl.u32 %v173, 16
    %v178 = vrot.slane %v176, 4
    %v179 = vshll.u32 %v173, 16
    %v181 = vrot.slane %v179, 5
    %v182 = vor.u32 %v178, %v181
    %v183 = vrot.slane %v182, 4
    %v185 = vshll.u32 %v174, 16
    %v187 = vrot.slane %v185, 5
    %v188 = vsel %vm103, %v183, %v187
    %v189 = vshrl.u32 %v174, 16
    %v191 = vrot.slane %v189, 4
    %v192 = vor.u32 %v191, %v187
    %v193 = vrot.slane %v192, 4
    %196 = vst.msk [vmem:[#allocation2 + $0x14] sm:$0xf] %vm78, %v188
    %v197 = vld [vmem:[#allocation2 + $0x1c] sm:$0xf]
    %v198 = vsel %vm126, %v193, %v197
    %199 = vst [vmem:[#allocation2 + $0x1c] sm:$0xf] %v198
    %v200 = vld [vmem:[#allocation2] sm:$0xff]
    %v201 = vld [vmem:[#allocation2 + $0x8] sm:$0xff]
    %v202 = vld [vmem:[#allocation2 + $0x10] sm:$0xff]
    %v203 = vld [vmem:[#allocation2 + $0x18] sm:$0xff]
    %v204 = vld [vmem:[#allocation6] sm:$0xff]
    %v205 = vld [vmem:[#allocation6 + $0x8] sm:$0xff]
    %v206 = vld [vmem:[#allocation6 + $0x10] sm:$0xff]
    %v207 = vld [vmem:[#allocation6 + $0x18] sm:$0xff]
    %v208 = vld [vmem:[#allocation6 + $0x20] sm:$0xff]
    %v209 = vld [vmem:[#allocation6 + $0x28] sm:$0xff]
    %v210 = vld [vmem:[#allocation6 + $0x30] sm:$0xff]
    %v211 = vld [vmem:[#allocation6 + $0x38] sm:$0xff]
    %v212 = vld [vmem:[#allocation6 + $0x40] sm:$0xff]
    %v213 = vld [vmem:[#allocation6 + $0x48] sm:$0xff]
    %v214 = vld [vmem:[#allocation6 + $0x50] sm:$0xff]
    %v215 = vld [vmem:[#allocation6 + $0x58] sm:$0xff]
    %v216 = vld [vmem:[#allocation6 + $0x60] sm:$0xff]
    %v217 = vld [vmem:[#allocation6 + $0x68] sm:$0xff]
    %v218 = vld [vmem:[#allocation6 + $0x70] sm:$0xff]
    %v219 = vld [vmem:[#allocation6 + $0x78] sm:$0xff]
    %v220 = vld [vmem:[#allocation6 + $0x80] sm:$0xff]
    %v221 = vld [vmem:[#allocation6 + $0x88] sm:$0xff]
    %v222 = vld [vmem:[#allocation6 + $0x90] sm:$0xff]
    %v223 = vld [vmem:[#allocation6 + $0x98] sm:$0xff]
    %v224 = vld [vmem:[#allocation6 + $0xa0] sm:$0xff]
    %v225 = vld [vmem:[#allocation6 + $0xa8] sm:$0xff]
    %v226 = vld [vmem:[#allocation6 + $0xb0] sm:$0xff]
    %v227 = vld [vmem:[#allocation6 + $0xb8] sm:$0xff]
    %v228 = vld [vmem:[%s2] sm:$0x3]
    %v230 = vlaneseq
    %v231 = vshrl.u32 %v230, 7
    %v232 = vsub.s32 0, %v231
    %v233 = vrot.slane %v228, %v232
    %v234 = vlaneseq
    %v235 = vshrl.u32 %v234, 7
    %v236 = vsub.s32 1, %v235
    %v237 = vrot.slane %v228, %v236
    %v244 = vunpack.c.l.b16 %v200
    %v245 = vunpack.c.h.b16 %v200
    %v246 = vunpack.c.l.b16 %v201
    %v247 = vunpack.c.h.b16 %v201
    %v248 = vunpack.c.l.b16 %v202
    %v249 = vunpack.c.h.b16 %v202
    %v250 = vunpack.c.l.b16 %v203
    %v251 = vunpack.c.h.b16 %v203
    %v252 = vpack.c.b16 %v246, %v244
    %v253 = vpack.c.b16 %v247, %v245
    %v254 = vpack.c.b16 %v250, %v248
    %v255 = vpack.c.b16 %v251, %v249
    %v282 = vunpack.c.l.b16 %v204
    %v283 = vunpack.c.h.b16 %v204
    %v284 = vunpack.c.l.b16 %v205
    %v285 = vunpack.c.h.b16 %v205
    %v286 = vunpack.c.l.b16 %v206
    %v287 = vunpack.c.h.b16 %v206
    %v288 = vunpack.c.l.b16 %v207
    %v289 = vunpack.c.h.b16 %v207
    %v290 = vunpack.c.l.b16 %v208
    %v291 = vunpack.c.h.b16 %v208
    %v292 = vunpack.c.l.b16 %v209
    %v293 = vunpack.c.h.b16 %v209
    %v294 = vunpack.c.l.b16 %v210
    %v295 = vunpack.c.h.b16 %v210
    %v296 = vunpack.c.l.b16 %v211
    %v297 = vunpack.c.h.b16 %v211
    %v298 = vunpack.c.l.b16 %v212
    %v299 = vunpack.c.h.b16 %v212
    %v300 = vunpack.c.l.b16 %v213
    %v301 = vunpack.c.h.b16 %v213
    %v302 = vunpack.c.l.b16 %v214
    %v303 = vunpack.c.h.b16 %v214
    %v304 = vunpack.c.l.b16 %v215
    %v305 = vunpack.c.h.b16 %v215
    %v306 = vunpack.c.l.b16 %v216
    %v307 = vunpack.c.h.b16 %v216
    %v308 = vunpack.c.l.b16 %v217
    %v309 = vunpack.c.h.b16 %v217
    %v310 = vunpack.c.l.b16 %v218
    %v311 = vunpack.c.h.b16 %v218
    %v312 = vunpack.c.l.b16 %v219
    %v313 = vunpack.c.h.b16 %v219
    %v314 = vunpack.c.l.b16 %v220
    %v315 = vunpack.c.h.b16 %v220
    %v316 = vunpack.c.l.b16 %v221
    %v317 = vunpack.c.h.b16 %v221
    %v318 = vunpack.c.l.b16 %v222
    %v319 = vunpack.c.h.b16 %v222
    %v320 = vunpack.c.l.b16 %v223
    %v321 = vunpack.c.h.b16 %v223
    %v322 = vunpack.c.l.b16 %v224
    %v323 = vunpack.c.h.b16 %v224
    %v324 = vunpack.c.l.b16 %v225
    %v325 = vunpack.c.h.b16 %v225
    %v326 = vunpack.c.l.b16 %v226
    %v327 = vunpack.c.h.b16 %v226
    %v328 = vunpack.c.l.b16 %v227
    %v329 = vunpack.c.h.b16 %v227
    %v330 = vpack.c.b16 %v284, %v282
    %v331 = vpack.c.b16 %v285, %v283
    %v332 = vpack.c.b16 %v288, %v286
    %v333 = vpack.c.b16 %v289, %v287
    %v334 = vpack.c.b16 %v292, %v290
    %v335 = vpack.c.b16 %v293, %v291
    %v336 = vpack.c.b16 %v296, %v294
    %v337 = vpack.c.b16 %v297, %v295
    %v338 = vpack.c.b16 %v300, %v298
    %v339 = vpack.c.b16 %v301, %v299
    %v340 = vpack.c.b16 %v304, %v302
    %v341 = vpack.c.b16 %v305, %v303
    %v342 = vpack.c.b16 %v308, %v306
    %v343 = vpack.c.b16 %v309, %v307
    %v344 = vpack.c.b16 %v312, %v310
    %v345 = vpack.c.b16 %v313, %v311
    %v346 = vpack.c.b16 %v316, %v314
    %v347 = vpack.c.b16 %v317, %v315
    %v348 = vpack.c.b16 %v320, %v318
    %v349 = vpack.c.b16 %v321, %v319
    %v350 = vpack.c.b16 %v324, %v322
    %v351 = vpack.c.b16 %v325, %v323
    %v352 = vpack.c.b16 %v328, %v326
    %v353 = vpack.c.b16 %v329, %v327
    %vm378 = vcmask 523264
    %v380 = vsel %vm378, %v253, 0
    %v383 = vsel %vm378, %v255, 0
    %385 = vmatprep.subr.bf16.mxu0 %v345
    %386 = vmatpush1.bf16.msra.mxu0 %v344
    %387 = vmatprep.subr.bf16.mxu0 %v343
    %388 = vmatpush1.bf16.msra.mxu0 %v342
    %389 = vmatprep.subr.bf16.mxu0 %v341
    %390 = vmatpush1.bf16.msra.mxu0 %v340
    %391 = vmatprep.subr.bf16.mxu0 %v339
    %392 = vmatpush1.bf16.msra.mxu0 %v338
    %393 = vmatprep.subr.bf16.mxu0 %v337
    %394 = vmatpush1.bf16.msra.mxu0 %v336
    %395 = vmatprep.subr.bf16.mxu0 %v335
    %396 = vmatpush1.bf16.msra.mxu0 %v334
    %397 = vmatprep.subr.bf16.mxu0 %v333
    %398 = vmatpush1.bf16.msra.mxu0 %v332
    %399 = vmatprep.subr.bf16.mxu0 %v331
    %400 = vmatpush1.bf16.msra.mxu0 %v330
    %401 = vmatprep.subr.bf16.mxu0 0
    %402 = vmatpush2.bf16.msra.mxu0 0
    %403 = vmatprep.subr.bf16.mxu0 0
    %404 = vmatpush2.bf16.msra.mxu0 0
    %405 = vmatprep.subr.bf16.mxu0 0
    %406 = vmatpush2.bf16.msra.mxu0 0
    %407 = vmatprep.subr.bf16.mxu0 0
    %408 = vmatpush2.bf16.msra.mxu0 0
    %409 = vmatprep.subr.bf16.mxu0 %v353
    %410 = vmatpush2.bf16.msra.mxu0 %v352
    %411 = vmatprep.subr.bf16.mxu0 %v351
    %412 = vmatpush2.bf16.msra.mxu0 %v350
    %413 = vmatprep.subr.bf16.mxu0 %v349
    %414 = vmatpush2.bf16.msra.mxu0 %v348
    %415 = vmatprep.subr.bf16.mxu0 %v347
    %416 = vmatpush2.bf16.msra.mxu0 %v346
    %417 = vmatprep.mubr.bf16.mxu0 %v380
    %418 = vmatmul.mubr.bf16.gmra.mxu0 %v252
    %v419 = vpop.f32.mrf.mxu0
    %v420 = vadd.f32 %v233, %v419
    %v421 = vpop.f32.mrf.mxu0
    %v422 = vadd.f32 %v237, %v421
    %v423 = vpop.f32.mrf.mxu0
    %v424 = vadd.f32 %v233, %v423
    %v425 = vpop.f32.mrf.mxu0
    %v426 = vadd.f32 %v237, %v425
    %427 = vmatprep.mubr.bf16.mxu0 %v383
    %428 = vmatmul.mubr.bf16.gmra.mxu0 %v254
    %v429 = vpop.f32.mrf.mxu0
    %v430 = vadd.f32 %v233, %v429
    %v431 = vpop.f32.mrf.mxu0
    %v432 = vadd.f32 %v237, %v431
    %v433 = vpop.f32.mrf.mxu0
    %v434 = vadd.f32 %v233, %v433
    %v435 = vpop.f32.mrf.mxu0
    %v436 = vadd.f32 %v237, %v435
    %437 = vdwg.mxu0
    %vm438 = vcmp.ge.f32.partialorder %v420, 0.0
    %vm439 = vcmp.ge.f32.partialorder %v422, 0.0
    %vm440 = vcmp.ge.f32.partialorder %v424, 0.0
    %vm441 = vcmp.ge.f32.partialorder %v426, 0.0
    %vm442 = vcmp.ge.f32.partialorder %v430, 0.0
    %vm443 = vcmp.ge.f32.partialorder %v432, 0.0
    %vm444 = vcmp.ge.f32.partialorder %v434, 0.0
    %vm445 = vcmp.ge.f32.partialorder %v436, 0.0
    %v446 = vmul.f32 %v420, 0.2
    %v447 = vmul.f32 %v422, 0.2
    %v448 = vmul.f32 %v424, 0.2
    %v449 = vmul.f32 %v426, 0.2
    %v450 = vmul.f32 %v430, 0.2
    %v451 = vmul.f32 %v432, 0.2
    %v452 = vmul.f32 %v434, 0.2
    %v453 = vmul.f32 %v436, 0.2
    %v454 = vsel %vm438, %v420, %v446
    %v455 = vsel %vm439, %v422, %v447
    %v456 = vsel %vm440, %v424, %v448
    %v457 = vsel %vm441, %v426, %v449
    %v458 = vsel %vm442, %v430, %v450
    %v459 = vsel %vm443, %v432, %v451
    %v460 = vsel %vm444, %v434, %v452
    %v461 = vsel %vm445, %v436, %v453
    %462 = vst [vmem:[#allocation8] sm:$0xff] %v454
    %463 = vst [vmem:[#allocation8 + $0x8] sm:$0xff] %v455
    %464 = vst [vmem:[#allocation8 + $0x10] sm:$0xff] %v456
    %465 = vst [vmem:[#allocation8 + $0x18] sm:$0xff] %v457
    %s466 = scalar_lea.vmem [#allocation8], 32
    %467 = vst [vmem:[%s466] sm:$0xff] %v458
    %468 = vst [vmem:[%s466 + $0x8] sm:$0xff] %v459
    %469 = vst [vmem:[%s466 + $0x10] sm:$0xff] %v460
    %470 = vst [vmem:[%s466 + $0x18] sm:$0xff] %v461
    // Predicated region
    $region22: #{tpu_custom_call.1} parent=1 // pred_check
      _
    $region23: #{tpu_custom_call.1} parent=1 // pred_check_branch
      %472 = sbr.rel (0) target = $region25
    $region24: #{tpu_custom_call.1} parent=1 // pred_region
      %s474 = ssub.s32 1024, 1024
      %475 = vsyncadd [#allocation5], %s474
      %s476 = sshll.u32 [#allocation8], 4
      %s477 = int_to_ptr.vmem [resolvable:$true] %s476
      %482 = dma.vmem_to_hbm [thread:$0]  %s477, 1024, %s3, [#allocation5], 256, 256, 16
    $region25: #{tpu_custom_call.1} parent=1 // pred_fallthru
      _
    // Predicated region
    $region26: #{tpu_custom_call.1} parent=1 // pred_check
      _
    $region27: #{tpu_custom_call.1} parent=1 // pred_check_branch
      %484 = sbr.rel (0) target = $region29
    $region28: #{tpu_custom_call.1} parent=1 // pred_region
      %485 = dma.done [#allocation5], 1024
    $region29: #{tpu_custom_call.1} parent=1 // pred_fallthru
      _
    %486 = vsyncpa [#allocation4], 1
    %487 = vsyncpa [#allocation7], 1
    %488 = vsyncpa [#allocation5], 1

</llo_original>
